<compile_context>
chip_gen: v5e
topology: v5e:2x2
jax: 0.10.0
libtpu: 0.0.40
codegen_flags: <defaults>
</compile_context>

<pallas_src>
import functools

import jax
import jax.numpy as jnp
from jax.experimental import pallas as pl
from jax.experimental.pallas import tpu as pltpu

LANE = 128


def _round_up(x, m):
    return ((x + m - 1) // m) * m


def _pick_tile(n_pad, target):
    """Largest tile (multiple of 128, <= target) that divides n_pad (multiple of 128)."""
    t = max(LANE, (min(target, n_pad) // LANE) * LANE)
    while n_pad % t:
        t -= LANE
    return t


def _vmem_budget_bytes():
    # 48 MiB on v7x (64 MiB physical), 96 MiB on v5e/v6e (128 MiB physical).
    try:
        cap = pltpu.get_tpu_info().vmem_capacity_bytes
    except Exception:
        cap = 64 << 20
    return int(min(96 << 20, (cap * 3) // 4))


def _compiler_params(dimension_semantics):
    return pltpu.CompilerParams(
        dimension_semantics=dimension_semantics,
        vmem_limit_bytes=_vmem_budget_bytes(),
    )


def _adj_block_spec(tm, tk, k_steps):
    """adj tile spec; deepen pipelining on the dominant HBM stream when useful."""
    index_map = lambda i, k: (i, k)
    if k_steps >= 3:
        try:
            return pl.BlockSpec((tm, tk), index_map, pipeline_mode=pl.Buffered(3))
        except TypeError:  # older BlockSpec without pipeline_mode
            pass
    return pl.BlockSpec((tm, tk), index_map)


def _resident_support_fits(n_p, sup_cols, tm, tk, acc_cols, out_cols, budget):
    """Conservative VMEM estimate for keeping the support slab resident."""
    sup_bytes = 2 * n_p * sup_cols * 2          # bf16 support slab (x2: buffer slack)
    adj_bytes = 3 * tm * tk * 2                 # up-to-triple-buffered bf16 adj stream
    acc_bytes = tm * acc_cols * 4               # f32 accumulator scratch (fused path)
    out_bytes = 2 * tm * out_cols * 4           # double-buffered output (f32 worst case)
    wgt_bytes = acc_cols * out_cols * 2         # resident W2 (fused path)
    total = sup_bytes + adj_bytes + acc_bytes + out_bytes + wgt_bytes + (2 << 20)
    return total < int(budget * 0.85)


# ---------------------------------------------------------------------------
# Stage 1: feature projection   s1 = x @ W1     (bf16 in/out, f32 MXU acc)
# ---------------------------------------------------------------------------
def _project_kernel(x_ref, w_ref, out_ref):
    out_ref[...] = jnp.dot(
        x_ref[...], w_ref[...], preferred_element_type=jnp.float32
    ).astype(out_ref.dtype)


def _project(x, w, tm):
    n, fin = x.shape
    fout = w.shape[1]
    return pl.pallas_call(
        _project_kernel,
        out_shape=jax.ShapeDtypeStruct((n, fout), jnp.bfloat16),
        grid_spec=pltpu.PrefetchScalarGridSpec(
            num_scalar_prefetch=0,
            grid=(n // tm,),
            in_specs=[
                pl.BlockSpec((tm, fin), lambda i: (i, 0)),
                pl.BlockSpec((fin, fout), lambda i: (0, 0)),
            ],
            out_specs=pl.BlockSpec((tm, fout), lambda i: (i, 0)),
        ),
        compiler_params=_compiler_params(("parallel",)),
    )(x, w)


# ---------------------------------------------------------------------------
# Stage 2 (fused): s2 = leaky_relu(adj @ s1 + b1) @ W2     -> bf16
#   adj tiled over (row, contraction); f32 accumulator; W2 resident.
# ---------------------------------------------------------------------------
def _agg_fused_kernel(adj_ref, s_ref, b_ref, w2_ref, out_ref, acc_ref, *,
                      scale, tk, resident):
    k = pl.program_id(1)

    @pl.when(k == 0)
    def _():
        acc_ref[...] = jnp.zeros_like(acc_ref)

    if resident:
        start = pl.multiple_of(k * tk, tk)
        s_blk = s_ref[pl.ds(start, tk), :]
    else:
        s_blk = s_ref[...]
    acc_ref[...] += jnp.dot(adj_ref[...], s_blk, preferred_element_type=jnp.float32)

    @pl.when(k == pl.num_programs(1) - 1)
    def _():
        h = acc_ref[...] + b_ref[...]
        h = jnp.where(h >= 0, h, scale * h)            # leaky_relu
        out_ref[...] = jnp.dot(                        # fused layer-2 projection
            h.astype(w2_ref.dtype), w2_ref[...],
            preferred_element_type=jnp.float32,
        ).astype(out_ref.dtype)


def _aggregate_fused(adj_p, s1, b1p, w2p, tm, tk, *, scale, resident):
    n_p = adj_p.shape[0]
    hid = s1.shape[1]
    cls = w2p.shape[1]
    k_steps = n_p // tk
    if resident:
        s_spec = pl.BlockSpec((n_p, hid), lambda i, k: (0, 0))   # resident slab
    else:
        s_spec = pl.BlockSpec((tk, hid), lambda i, k: (k, 0))    # streamed fallback
    kern = functools.partial(_agg_fused_kernel, scale=scale, tk=tk, resident=resident)
    return pl.pallas_call(
        kern,
        out_shape=jax.ShapeDtypeStruct((n_p, cls), jnp.bfloat16),
        grid_spec=pltpu.PrefetchScalarGridSpec(
            num_scalar_prefetch=0,
            grid=(n_p // tm, k_steps),
            in_specs=[
                _adj_block_spec(tm, tk, k_steps),                 # adj row/K tile
                s_spec,                                           # support
                pl.BlockSpec((1, hid), lambda i, k: (0, 0)),      # b1 (resident)
                pl.BlockSpec((hid, cls), lambda i, k: (0, 0)),    # W2 (resident)
            ],
            out_specs=pl.BlockSpec((tm, cls), lambda i, k: (i, 0)),
            scratch_shapes=[pltpu.VMEM((tm, hid), jnp.float32)],
        ),
        compiler_params=_compiler_params(("parallel", "arbitrary")),
    )(adj_p, s1, b1p, w2p)


# ---------------------------------------------------------------------------
# Stage 3: out = log_softmax(adj @ s2 + b2)   (accumulate directly in out_ref)
# ---------------------------------------------------------------------------
def _agg_final_kernel(adj_ref, s_ref, b_ref, out_ref, *, tk, resident, valid_cols):
    k = pl.program_id(1)

    @pl.when(k == 0)
    def _():
        out_ref[...] = jnp.zeros_like(out_ref)

    if resident:
        start = pl.multiple_of(k * tk, tk)
        s_blk = s_ref[pl.ds(start, tk), :]
    else:
        s_blk = s_ref[...]
    out_ref[...] += jnp.dot(adj_ref[...], s_blk, preferred_element_type=jnp.float32)

    @pl.when(k == pl.num_programs(1) - 1)
    def _():
        h = out_ref[...] + b_ref[...]
        lane = jax.lax.broadcasted_iota(jnp.int32, h.shape, 1)
        valid = lane < valid_cols
        hm = jnp.where(valid, h, -jnp.inf)             # mask padded class lanes
        m = jnp.max(hm, axis=1, keepdims=True)
        shifted = hm - m
        lse = jnp.log(jnp.sum(jnp.exp(shifted), axis=1, keepdims=True))
        out_ref[...] = jnp.where(valid, shifted - lse, 0.0)


def _aggregate_final(adj_p, s2, b2p, tm, tk, *, resident, valid_cols):
    n_p = adj_p.shape[0]
    cls = s2.shape[1]
    k_steps = n_p // tk
    if resident:
        s_spec = pl.BlockSpec((n_p, cls), lambda i, k: (0, 0))
    else:
        s_spec = pl.BlockSpec((tk, cls), lambda i, k: (k, 0))
    kern = functools.partial(_agg_final_kernel, tk=tk, resident=resident,
                             valid_cols=valid_cols)
    return pl.pallas_call(
        kern,
        out_shape=jax.ShapeDtypeStruct((n_p, cls), jnp.float32),
        grid_spec=pltpu.PrefetchScalarGridSpec(
            num_scalar_prefetch=0,
            grid=(n_p // tm, k_steps),
            in_specs=[
                _adj_block_spec(tm, tk, k_steps),
                s_spec,
                pl.BlockSpec((1, cls), lambda i, k: (0, 0)),
            ],
            out_specs=pl.BlockSpec((tm, cls), lambda i, k: (i, 0)),
        ),
        compiler_params=_compiler_params(("parallel", "arbitrary")),
    )(adj_p, s2, b2p)


# ---------------------------------------------------------------------------
# Input preparation (hoisted out of the hot path for repeated inference).
# ---------------------------------------------------------------------------
def prepare_gcn_inputs(x, adj, w1, b1, w2, b2):
    N, nfeat = x.shape
    nhid = w1.shape[1]
    nclass = w2.shape[1]
    n_p = _round_up(N, LANE)
    fin_p = _round_up(nfeat, LANE)
    hid_p = _round_up(nhid, LANE)
    cls_p = _round_up(nclass, LANE)

    bf16, f32 = jnp.bfloat16, jnp.float32
    xp = jnp.zeros((n_p, fin_p), bf16).at[:N, :nfeat].set(x.astype(bf16))
    adj_p = jnp.zeros((n_p, n_p), bf16).at[:N, :N].set(adj.astype(bf16))
    w1p = jnp.zeros((fin_p, hid_p), bf16).at[:nfeat, :nhid].set(w1.astype(bf16))
    b1p = jnp.zeros((1, hid_p), f32).at[:, :nhid].set(b1.astype(f32))
    w2p = jnp.zeros((hid_p, cls_p), bf16).at[:nhid, :nclass].set(w2.astype(bf16))
    b2p = jnp.zeros((1, cls_p), f32).at[:, :nclass].set(b2.astype(f32))

    dims = dict(N=N, nclass=nclass, n_p=n_p, fin_p=fin_p, hid_p=hid_p, cls_p=cls_p)
    return (xp, adj_p, w1p, b1p, w2p, b2p), dims


def gcn_forward_prepared(padded, dims, scale, *, tm=512, tk=2048):
    """GCN forward on padded/cast inputs.  `scale` must be a Python float
    (it is baked into the kernel as a compile-time constant)."""
    xp, adj_p, w1p, b1p, w2p, b2p = padded
    n_p, hid_p, cls_p = dims["n_p"], dims["hid_p"], dims["cls_p"]

    # Tile selection: big tiles amortize per-step overhead; cap tm so the
    # parallel row axis has >= 2 tiles (v7x dual TensorCore) when possible.
    tm_target = tm
    if n_p >= 2 * LANE:
        tm_target = min(tm_target, n_p // 2)
    tm = _pick_tile(n_p, tm_target)
    tk = _pick_tile(n_p, tk)

    budget = _vmem_budget_bytes()

    # ---- layer 1 projection: s1 = x @ W1 (bf16) ----
    s1 = _project(xp, w1p, tm)                                    # [n_p, hid_p] bf16

    # ---- fused layer-1 aggregate + layer-2 projection ----
    res1 = _resident_support_fits(n_p, hid_p, tm, tk, hid_p, cls_p, budget)
    s2 = _aggregate_fused(adj_p, s1, b1p, w2p, tm, tk,
                          scale=scale, resident=res1)             # [n_p, cls_p] bf16

    # TODO(synk): F.dropout(training=self.training) — identity in inference mode;
    # training-mode dropout would need pltpu.prng_seed / prng_random_bits.

    # ---- layer 2 aggregate + log_softmax(dim=1) ----
    res2 = _resident_support_fits(n_p, cls_p, tm, tk, 0, cls_p, budget)
    out_p = _aggregate_final(adj_p, s2, b2p, tm, tk,
                             resident=res2, valid_cols=dims["nclass"])
    return out_p


def gcn_forward(x, adj, w1, b1, w2, b2, scale, *, tm=512, tk=2048):
    padded, dims = prepare_gcn_inputs(x, adj, w1, b1, w2, b2)
    out_p = gcn_forward_prepared(padded, dims, scale, tm=tm, tk=tk)
    return out_p[: dims["N"], : dims["nclass"]]


def normalize_adj_dense(a):
    """Symmetric normalization D^-1/2 A D^-1/2 (dense, plain JAX glue).
    NOTE: (a @ d).T @ d == D^-1/2 A D^-1/2 only because `a` is symmetric here."""
    rowsum = jnp.sum(a, axis=1)
    r_inv_sqrt = jnp.power(rowsum, -0.5)
    r_inv_sqrt = jnp.where(jnp.isinf(r_inv_sqrt), 0.0, r_inv_sqrt)
    d = jnp.diag(r_inv_sqrt)
    return (a @ d).T @ d


if __name__ == "__main__":
    # Small shapes consistent with the module
    N = 16        # number of graph nodes
    nfeat = 32
    nhid = 32
    nclass = 8
    scale = 0.2   # leaky_relu negative slope
    dropout = 0.5 # unused at inference

    key = jax.random.PRNGKey(0)
    kx, ka, kw1, kb1, kw2, kb2 = jax.random.split(key, 6)

    # Node features
    x = jax.random.normal(kx, (N, nfeat), dtype=jnp.float32)

    # Random symmetric adjacency + self loops, symmetric normalization
    a_raw = (jax.random.uniform(ka, (N, N)) > 0.7).astype(jnp.float32)
    a_raw = jnp.maximum(a_raw, a_raw.T)
    adj = normalize_adj_dense(a_raw + jnp.eye(N, dtype=jnp.float32)).astype(jnp.float32)

    # GraphConvolution params: uniform(-stdv, stdv), stdv = 1/sqrt(fan_out)
    stdv1 = 1.0 / jnp.sqrt(float(nhid))
    w1 = jax.random.uniform(kw1, (nfeat, nhid), minval=-stdv1, maxval=stdv1,
                            dtype=jnp.float32)
    b1 = jax.random.uniform(kb1, (1, nhid), minval=-stdv1, maxval=stdv1,
                            dtype=jnp.float32)
    stdv2 = 1.0 / jnp.sqrt(float(nclass))
    w2 = jax.random.uniform(kw2, (nhid, nclass), minval=-stdv2, maxval=stdv2,
                            dtype=jnp.float32)
    b2 = jax.random.uniform(kb2, (1, nclass), minval=-stdv2, maxval=stdv2,
                            dtype=jnp.float32)

    out = gcn_forward(x, adj, w1, b1, w2, b2, scale)
    jax.block_until_ready(out)
    assert out.shape == (N, nclass)

    # Reference with the same bf16 quantization points as the kernel
    bf = lambda a: a.astype(jnp.bfloat16).astype(jnp.float32)
    adj_q, x_q, w1_q, w2_q = bf(adj), bf(x), bf(w1), bf(w2)
    s1_ref = bf(x_q @ w1_q)
    h1_ref = adj_q @ s1_ref + b1
    h1_ref = jnp.where(h1_ref >= 0, h1_ref, scale * h1_ref)
    s2_ref = bf(bf(h1_ref) @ w2_q)
    h2_ref = adj_q @ s2_ref + b2
    ref = jax.nn.log_softmax(h2_ref, axis=1)

    assert jnp.allclose(out, ref, atol=5e-2, rtol=5e-2), (
        float(jnp.max(jnp.abs(out - ref))))
    # log_softmax self-consistency: probabilities sum to 1 per row
    assert jnp.allclose(jnp.sum(jnp.exp(out), axis=1), 1.0, atol=2e-3)

    print("KERNEL_OK")
</pallas_src>

<mosaic_0001>
module attributes {stable_mosaic.version = 11 : i64} {
  func.func @_project_kernel(%arg0: i32, %arg1: memref<128x128xbf16, #tpu.memory_space<vmem>>, %arg2: memref<128x128xbf16, #tpu.memory_space<vmem>>, %arg3: memref<128x128xbf16, #tpu.memory_space<vmem>>) attributes {dimension_semantics = [#tpu.dimension_semantics<parallel>], iteration_bounds = array<i64: 1>, scalar_prefetch = 0 : i64, scratch_operands = 0 : i64, tpu.core_type = #tpu.core_type<tc>, window_params = [{transform_indices = @transform_0, window_bounds = array<i64: 128, 128>}, {pipeline_mode = #tpu.pipeline_mode<synchronous>, transform_indices = @transform_1, window_bounds = array<i64: 128, 128>}, {transform_indices = @transform_2, window_bounds = array<i64: 128, 128>}]} {
    %c0 = arith.constant 0 : index
    %c0_0 = arith.constant 0 : index
    %0 = vector.load %arg1[%c0, %c0_0] : memref<128x128xbf16, #tpu.memory_space<vmem>>, vector<128x128xbf16>
    %c0_1 = arith.constant 0 : index
    %c0_2 = arith.constant 0 : index
    %1 = vector.load %arg2[%c0_1, %c0_2] : memref<128x128xbf16, #tpu.memory_space<vmem>>, vector<128x128xbf16>
    %cst = arith.constant dense<0.000000e+00> : vector<128x128xf32>
    %2 = tpu.matmul %0, %1, %cst {dimension_numbers = #tpu.dot_dimension_numbers<[1], [0], [0], [1], [0, 0, 1, 1], [], []>} : vector<128x128xbf16>, vector<128x128xbf16>, vector<128x128xf32> -> vector<128x128xf32>
    %3 = arith.truncf %2 : vector<128x128xf32> to vector<128x128xbf16>
    %c0_3 = arith.constant 0 : index
    %c0_4 = arith.constant 0 : index
    %4 = vector.load %arg3[%c0_3, %c0_4] : memref<128x128xbf16, #tpu.memory_space<vmem>>, vector<128x128xbf16>
    tpu.vector_store %arg3[%c0_3, %c0_4], %3 {strides = array<i32>} : memref<128x128xbf16, #tpu.memory_space<vmem>>, vector<128x128xbf16>,
    return
  }
  func.func @transform_0(%arg0: i32) -> (i32, i32) {
    %c0_i32 = arith.constant 0 : i32
    %c0_i32_0 = arith.constant 0 : i32
    return %arg0, %c0_i32 : i32, i32
  }
  func.func @transform_1(%arg0: i32) -> (i32, i32) {
    %c0_i32 = arith.constant 0 : i32
    %c0_i32_0 = arith.constant 0 : i32
    %c0_i32_1 = arith.constant 0 : i32
    return %c0_i32, %c0_i32_0 : i32, i32
  }
  func.func @transform_2(%arg0: i32) -> (i32, i32) {
    %c0_i32 = arith.constant 0 : i32
    %c0_i32_0 = arith.constant 0 : i32
    return %arg0, %c0_i32 : i32, i32
  }
}

</mosaic_0001>

<llo_original>
// kernel: tpu_custom_call.1
$region0: #{tpu_custom_call.1}
  #allocation0 [shape = 'u32[]', space=smem, size = 0x4, offset = 0x4, fixed_abs, tag = 'smem constant byte address 0x4 - core index']
  #allocation1 [shape = 'u32[72,128]{1,0:T(1,128)}', space=vmem, size = 0x9000, scoped, tag = 'internal scratch']
  %s0 = inlined_call_operand.hbm [shape: bf16[128,128], index: 0, kind: input, shape index: {}]
  %s1 = inlined_call_operand.hbm [shape: bf16[128,128], index: 1, kind: input, shape index: {}]
  %s2 = inlined_call_operand.hbm [shape: bf16[128,128], index: 2, kind: output, shape index: {}]
  %s3 = sld [smem:[#allocation0]]
  $region26: #{tpu_custom_call.1} parent=0
    _
  %s5 = ssub.s32 1, %s3
  %s6 = scalar_select 0, %s5, %s3
  $region1: #{tpu_custom_call.1} parent=0
    #allocation2 [shape = 'u8[32768]{0}', space=vmem, size = 0x8000, scoped, tag = 'input window, operand 0, single buffered']
    #allocation3 [shape = 's32[1]{0}', space=sflag, size = 0x4, scoped, tag = 'scoped memory for tpu_custom_call.1']
    #allocation4 [shape = 's32[1]{0}', space=sflag, size = 0x4, scoped, tag = 'scoped memory for tpu_custom_call.1']
    #allocation5 [shape = 'u8[32768]{0}', space=vmem, size = 0x8000, scoped, tag = 'input window, operand 1, single buffered']
    #allocation6 [shape = 's32[1]{0}', space=sflag, size = 0x4, scoped, tag = 'scoped memory for tpu_custom_call.1']
    #allocation7 [shape = 'u8[32768]{0}', space=vmem, size = 0x8000, scoped, tag = 'output window, operand 0, single buffered']
    %7 = vsyncpa [#allocation3], 0
    %8 = vsyncpa [#allocation6], 0
    %9 = vsyncpa [#allocation4], 0
    // Predicated region
    $region2: #{tpu_custom_call.1} parent=1 // pred_check
      _
    $region3: #{tpu_custom_call.1} parent=1 // pred_check_branch
      %11 = sbr.rel (0) target = $region5
    $region4: #{tpu_custom_call.1} parent=1 // pred_region
      %13 = vsyncadd [#allocation3], 0
      %s14 = sshll.u32 %s0, 4
      %s15 = int_to_ptr.hbm [resolvable:$true] %s14
      %s16 = sshll.u32 [#allocation2], 4
      %s17 = int_to_ptr.vmem [resolvable:$true] %s16
      %22 = dma.hbm_to_vmem [thread:$0]  %s15, 1024, %s17, [#allocation3], 64, 64, 4
    $region5: #{tpu_custom_call.1} parent=1 // pred_fallthru
      _
    // Predicated region
    $region6: #{tpu_custom_call.1} parent=1 // pred_check
      _
    $region7: #{tpu_custom_call.1} parent=1 // pred_check_branch
      %24 = sbr.rel (0) target = $region9
    $region8: #{tpu_custom_call.1} parent=1 // pred_region
      %26 = vsyncadd [#allocation6], 0
      %s27 = sshll.u32 %s1, 4
      %s28 = int_to_ptr.hbm [resolvable:$true] %s27
      %s29 = sshll.u32 [#allocation5], 4
      %s30 = int_to_ptr.vmem [resolvable:$true] %s29
      %35 = dma.hbm_to_vmem [thread:$0]  %s28, 1024, %s30, [#allocation6], 64, 64, 4
    $region9: #{tpu_custom_call.1} parent=1 // pred_fallthru
      _
    // Predicated region
    $region10: #{tpu_custom_call.1} parent=1 // pred_check
      _
    $region11: #{tpu_custom_call.1} parent=1 // pred_check_branch
      %37 = sbr.rel (0) target = $region13
    $region12: #{tpu_custom_call.1} parent=1 // pred_region
      %39 = dma.done [#allocation3], 1024
    $region13: #{tpu_custom_call.1} parent=1 // pred_fallthru
      _
    // Predicated region
    $region14: #{tpu_custom_call.1} parent=1 // pred_check
      _
    $region15: #{tpu_custom_call.1} parent=1 // pred_check_branch
      %41 = sbr.rel (0) target = $region17
    $region16: #{tpu_custom_call.1} parent=1 // pred_region
      %43 = dma.done [#allocation6], 1024
    $region17: #{tpu_custom_call.1} parent=1 // pred_fallthru
      _
    %v44 = vld [vmem:[#allocation2] sm:$0xf]
    %v45 = vld [vmem:[#allocation2 + $0x4] sm:$0xf]
    %v46 = vld [vmem:[#allocation2 + $0x8] sm:$0xf]
    %v47 = vld [vmem:[#allocation2 + $0xc] sm:$0xf]
    %v48 = vld [vmem:[#allocation2 + $0x10] sm:$0xf]
    %v49 = vld [vmem:[#allocation2 + $0x14] sm:$0xf]
    %v50 = vld [vmem:[#allocation2 + $0x18] sm:$0xf]
    %v51 = vld [vmem:[#allocation2 + $0x1c] sm:$0xf]
    %v52 = vld [vmem:[#allocation2 + $0x20] sm:$0xf]
    %v53 = vld [vmem:[#allocation2 + $0x24] sm:$0xf]
    %v54 = vld [vmem:[#allocation2 + $0x28] sm:$0xf]
    %v55 = vld [vmem:[#allocation2 + $0x2c] sm:$0xf]
    %v56 = vld [vmem:[#allocation2 + $0x30] sm:$0xf]
    %v57 = vld [vmem:[#allocation2 + $0x34] sm:$0xf]
    %v58 = vld [vmem:[#allocation2 + $0x38] sm:$0xf]
    %v59 = vld [vmem:[#allocation2 + $0x3c] sm:$0xf]
    %v60 = vld [vmem:[#allocation5] sm:$0xf]
    %v61 = vld [vmem:[#allocation5 + $0x4] sm:$0xf]
    %v62 = vld [vmem:[#allocation5 + $0x8] sm:$0xf]
    %v63 = vld [vmem:[#allocation5 + $0xc] sm:$0xf]
    %v64 = vld [vmem:[#allocation5 + $0x10] sm:$0xf]
    %v65 = vld [vmem:[#allocation5 + $0x14] sm:$0xf]
    %v66 = vld [vmem:[#allocation5 + $0x18] sm:$0xf]
    %v67 = vld [vmem:[#allocation5 + $0x1c] sm:$0xf]
    %v68 = vld [vmem:[#allocation5 + $0x20] sm:$0xf]
    %v69 = vld [vmem:[#allocation5 + $0x24] sm:$0xf]
    %v70 = vld [vmem:[#allocation5 + $0x28] sm:$0xf]
    %v71 = vld [vmem:[#allocation5 + $0x2c] sm:$0xf]
    %v72 = vld [vmem:[#allocation5 + $0x30] sm:$0xf]
    %v73 = vld [vmem:[#allocation5 + $0x34] sm:$0xf]
    %v74 = vld [vmem:[#allocation5 + $0x38] sm:$0xf]
    %v75 = vld [vmem:[#allocation5 + $0x3c] sm:$0xf]
    %v92 = vunpack.c.l.b16 %v44
    %v93 = vunpack.c.l.b16 %v45
    %v94 = vunpack.c.l.b16 %v46
    %v95 = vunpack.c.l.b16 %v47
    %v96 = vunpack.c.l.b16 %v48
    %v97 = vunpack.c.l.b16 %v49
    %v98 = vunpack.c.l.b16 %v50
    %v99 = vunpack.c.l.b16 %v51
    %v100 = vunpack.c.l.b16 %v52
    %v101 = vunpack.c.l.b16 %v53
    %v102 = vunpack.c.l.b16 %v54
    %v103 = vunpack.c.l.b16 %v55
    %v104 = vunpack.c.l.b16 %v56
    %v105 = vunpack.c.l.b16 %v57
    %v106 = vunpack.c.l.b16 %v58
    %v107 = vunpack.c.l.b16 %v59
    %v108 = vpack.c.b16 %v93, %v92
    %v109 = vpack.c.b16 %v95, %v94
    %v110 = vpack.c.b16 %v97, %v96
    %v111 = vpack.c.b16 %v99, %v98
    %v112 = vpack.c.b16 %v101, %v100
    %v113 = vpack.c.b16 %v103, %v102
    %v114 = vpack.c.b16 %v105, %v104
    %v115 = vpack.c.b16 %v107, %v106
    %v140 = vunpack.c.l.b16 %v60
    %v141 = vunpack.c.l.b16 %v61
    %v142 = vunpack.c.l.b16 %v62
    %v143 = vunpack.c.l.b16 %v63
    %v144 = vunpack.c.l.b16 %v64
    %v145 = vunpack.c.l.b16 %v65
    %v146 = vunpack.c.l.b16 %v66
    %v147 = vunpack.c.l.b16 %v67
    %v148 = vunpack.c.l.b16 %v68
    %v149 = vunpack.c.l.b16 %v69
    %v150 = vunpack.c.l.b16 %v70
    %v151 = vunpack.c.l.b16 %v71
    %v152 = vunpack.c.l.b16 %v72
    %v153 = vunpack.c.l.b16 %v73
    %v154 = vunpack.c.l.b16 %v74
    %v155 = vunpack.c.l.b16 %v75
    %v156 = vpack.c.b16 %v141, %v140
    %v157 = vpack.c.b16 %v143, %v142
    %v158 = vpack.c.b16 %v145, %v144
    %v159 = vpack.c.b16 %v147, %v146
    %v160 = vpack.c.b16 %v149, %v148
    %v161 = vpack.c.b16 %v151, %v150
    %v162 = vpack.c.b16 %v153, %v152
    %v163 = vpack.c.b16 %v155, %v154
    %172 = vmatpush.bf16.msra.mxu0 %v163
    %173 = vmatpush.bf16.msra.mxu0 %v162
    %174 = vmatpush.bf16.msra.mxu0 %v161
    %175 = vmatpush.bf16.msra.mxu0 %v160
    %176 = vmatpush.bf16.msra.mxu0 %v159
    %177 = vmatpush.bf16.msra.mxu0 %v158
    %178 = vmatpush.bf16.msra.mxu0 %v157
    %179 = vmatpush.bf16.msra.mxu0 %v156
    %180 = vmatmul.bf16.gmra.mxu0 %v108
    %v181 = vpop.f32.mrf.mxu0
    %v182 = vadd.f32 0.0, %v181
    %v183 = vpop.f32.mrf.mxu0
    %v184 = vadd.f32 0.0, %v183
    %185 = vmatmul.bf16.gmra.mxu0 %v109
    %v186 = vpop.f32.mrf.mxu0
    %v187 = vadd.f32 0.0, %v186
    %v188 = vpop.f32.mrf.mxu0
    %v189 = vadd.f32 0.0, %v188
    %190 = vmatmul.bf16.gmra.mxu0 %v110
    %v191 = vpop.f32.mrf.mxu0
    %v192 = vadd.f32 0.0, %v191
    %v193 = vpop.f32.mrf.mxu0
    %v194 = vadd.f32 0.0, %v193
    %195 = vmatmul.bf16.gmra.mxu0 %v111
    %v196 = vpop.f32.mrf.mxu0
    %v197 = vadd.f32 0.0, %v196
    %v198 = vpop.f32.mrf.mxu0
    %v199 = vadd.f32 0.0, %v198
    %200 = vmatmul.bf16.gmra.mxu0 %v112
    %v201 = vpop.f32.mrf.mxu0
    %v202 = vadd.f32 0.0, %v201
    %v203 = vpop.f32.mrf.mxu0
    %v204 = vadd.f32 0.0, %v203
    %205 = vmatmul.bf16.gmra.mxu0 %v113
    %v206 = vpop.f32.mrf.mxu0
    %v207 = vadd.f32 0.0, %v206
    %v208 = vpop.f32.mrf.mxu0
    %v209 = vadd.f32 0.0, %v208
    %210 = vmatmul.bf16.gmra.mxu0 %v114
    %v211 = vpop.f32.mrf.mxu0
    %v212 = vadd.f32 0.0, %v211
    %v213 = vpop.f32.mrf.mxu0
    %v214 = vadd.f32 0.0, %v213
    %215 = vmatmul.bf16.gmra.mxu0 %v115
    %v216 = vpop.f32.mrf.mxu0
    %v217 = vadd.f32 0.0, %v216
    %v218 = vpop.f32.mrf.mxu0
    %v219 = vadd.f32 0.0, %v218
    %220 = vdwg.mxu0
    %v221 = vpack.c.bf16 %v182, %v182
    %v222 = vpack.c.bf16 %v184, %v184
    %v223 = vpack.c.bf16 %v187, %v187
    %v224 = vpack.c.bf16 %v189, %v189
    %v225 = vpack.c.bf16 %v192, %v192
    %v226 = vpack.c.bf16 %v194, %v194
    %v227 = vpack.c.bf16 %v197, %v197
    %v228 = vpack.c.bf16 %v199, %v199
    %v229 = vpack.c.bf16 %v202, %v202
    %v230 = vpack.c.bf16 %v204, %v204
    %v231 = vpack.c.bf16 %v207, %v207
    %v232 = vpack.c.bf16 %v209, %v209
    %v233 = vpack.c.bf16 %v212, %v212
    %v234 = vpack.c.bf16 %v214, %v214
    %v235 = vpack.c.bf16 %v217, %v217
    %v236 = vpack.c.bf16 %v219, %v219
    %237 = vst [vmem:[#allocation7] sm:$0xf] %v221
    %238 = vst [vmem:[#allocation7 + $0x4] sm:$0xf] %v222
    %239 = vst [vmem:[#allocation7 + $0x8] sm:$0xf] %v223
    %240 = vst [vmem:[#allocation7 + $0xc] sm:$0xf] %v224
    %241 = vst [vmem:[#allocation7 + $0x10] sm:$0xf] %v225
    %242 = vst [vmem:[#allocation7 + $0x14] sm:$0xf] %v226
    %243 = vst [vmem:[#allocation7 + $0x18] sm:$0xf] %v227
    %244 = vst [vmem:[#allocation7 + $0x1c] sm:$0xf] %v228
    %245 = vst [vmem:[#allocation7 + $0x20] sm:$0xf] %v229
    %246 = vst [vmem:[#allocation7 + $0x24] sm:$0xf] %v230
    %247 = vst [vmem:[#allocation7 + $0x28] sm:$0xf] %v231
    %248 = vst [vmem:[#allocation7 + $0x2c] sm:$0xf] %v232
    %249 = vst [vmem:[#allocation7 + $0x30] sm:$0xf] %v233
    %250 = vst [vmem:[#allocation7 + $0x34] sm:$0xf] %v234
    %251 = vst [vmem:[#allocation7 + $0x38] sm:$0xf] %v235
    %252 = vst [vmem:[#allocation7 + $0x3c] sm:$0xf] %v236
    // Predicated region
    $region18: #{tpu_custom_call.1} parent=1 // pred_check
      _
    $region19: #{tpu_custom_call.1} parent=1 // pred_check_branch
      %254 = sbr.rel (0) target = $region21
    $region20: #{tpu_custom_call.1} parent=1 // pred_region
      %256 = vsyncadd [#allocation4], 0
      %s257 = sshll.u32 [#allocation7], 4
      %s258 = int_to_ptr.vmem [resolvable:$true] %s257
      %s259 = sshll.u32 %s2, 4
      %s260 = int_to_ptr.hbm [resolvable:$true] %s259
      %265 = dma.vmem_to_hbm [thread:$0]  %s258, 1024, %s260, [#allocation4], 64, 64, 4
    $region21: #{tpu_custom_call.1} parent=1 // pred_fallthru
      _
    // Predicated region
    $region22: #{tpu_custom_call.1} parent=1 // pred_check
      _
    $region23: #{tpu_custom_call.1} parent=1 // pred_check_branch
      %267 = sbr.rel (0) target = $region25
    $region24: #{tpu_custom_call.1} parent=1 // pred_region
      %269 = dma.done [#allocation4], 1024
    $region25: #{tpu_custom_call.1} parent=1 // pred_fallthru
      _
    %270 = vsyncpa [#allocation3], 1
    %271 = vsyncpa [#allocation6], 1
    %272 = vsyncpa [#allocation4], 1

</llo_original>
